<compile_context>
chip_gen: v5e
topology: v5e:2x2
jax: 0.10.0
libtpu: 0.0.40
codegen_flags: <defaults>
</compile_context>

<pallas_src>
import jax
import jax.numpy as jnp
from jax.experimental import pallas as pl
from jax.experimental.pallas import tpu as pltpu

EPS = 1e-5
LANE = 128
TM = 256          # pixel rows per grid step for the matmul / finalize kernels


# ---------------------------------------------------------------------------
# small helpers
# ---------------------------------------------------------------------------
def _round_up(x, m):
    return (x + m - 1) // m * m


def _pad_axis(x, size, axis):
    pad = size - x.shape[axis]
    if pad <= 0:
        return x
    widths = [(0, 0)] * x.ndim
    widths[axis] = (0, pad)
    return jnp.pad(x, widths)


def _im2col(x_nhwc, ksize, stride, pad):
    """(N,H,W,C) -> ((N*Ho*Wo, k*k*C), (Ho, Wo)); column order = (dy, dx, c)."""
    N, H, W, C = x_nhwc.shape
    xp = jnp.pad(x_nhwc, ((0, 0), (pad, pad), (pad, pad), (0, 0)))
    Ho = (H + 2 * pad - ksize) // stride + 1
    Wo = (W + 2 * pad - ksize) // stride + 1
    cols = []
    for dy in range(ksize):
        for dx in range(ksize):
            cols.append(xp[:, dy:dy + stride * Ho:stride,
                           dx:dx + stride * Wo:stride, :])
    P = jnp.concatenate(cols, axis=-1)
    return P.reshape(N * Ho * Wo, ksize * ksize * C), (Ho, Wo)


# ---------------------------------------------------------------------------
# Pallas kernels
# ---------------------------------------------------------------------------
def _matmul_stats_kernel(p_ref, w_ref, y_ref, stats_ref):
    """y = P @ W (bf16 in, f32 acc); also emit per-tile [sum; sum_sq] over rows."""
    y = jnp.dot(p_ref[...], w_ref[...], preferred_element_type=jnp.float32)
    y_ref[...] = y
    s = jnp.sum(y, axis=0, keepdims=True)
    ss = jnp.sum(y * y, axis=0, keepdims=True)
    stats_ref[...] = jnp.concatenate([s, ss], axis=0)[None]


def _matmul_with_stats(P_bf16, W_bf16):
    Mp, K = P_bf16.shape
    _, Cp = W_bf16.shape
    nt = Mp // TM
    return pl.pallas_call(
        _matmul_stats_kernel,
        out_shape=(jax.ShapeDtypeStruct((Mp, Cp), jnp.float32),
                   jax.ShapeDtypeStruct((nt, 2, Cp), jnp.float32)),
        grid=(nt,),
        in_specs=[pl.BlockSpec((TM, K), lambda i: (i, 0)),
                  pl.BlockSpec((K, Cp), lambda i: (0, 0))],
        out_specs=(pl.BlockSpec((TM, Cp), lambda i: (i, 0)),
                   pl.BlockSpec((1, 2, Cp), lambda i: (i, 0, 0))),
        compiler_params=pltpu.CompilerParams(
            dimension_semantics=("parallel",)),
    )(P_bf16, W_bf16)


def _conv2_kernel(a_ref, scale_ref, shift_ref, w_ref, y_ref, stats_ref):
    """Per-image 3x3 conv (stride 1, pad 1) with in-kernel im2col.

    a_ref   : (1, Ho+2, Wo+2, Cp) raw conv1 output, zero halo ring
    scale/shift : (1, 1, Cp) BN1 affine (precomputed scale/shift form)
    w_ref   : (9, Cp, Cp) bf16 weights, tap-major
    y_ref   : (1, Ho*Wo, Cp) raw conv2 output (pre-BN2)
    stats_ref : (1, 2, Cp) per-image [sum; sum_sq] for BN2
    """
    _, Hp2, Wp2, Cp = a_ref.shape
    Ho, Wo = Hp2 - 2, Wp2 - 2
    Co = w_ref.shape[2]

    a = a_ref[0]                                                    # (Hp2, Wp2, Cp)
    # fused BN1 + ReLU (single multiply-add per element)
    a = jnp.maximum(a * scale_ref[...] + shift_ref[...], 0.0)
    # conv2's zero padding applies AFTER BN1/ReLU -> re-zero the halo ring
    rows = jax.lax.broadcasted_iota(jnp.int32, (Hp2, Wp2, 1), 0)
    cols = jax.lax.broadcasted_iota(jnp.int32, (Hp2, Wp2, 1), 1)
    interior = (rows >= 1) & (rows <= Ho) & (cols >= 1) & (cols <= Wo)
    a = jnp.where(interior, a, 0.0)

    # in-kernel im2col: 9 shifted slices -> 9 MXU dots, f32 accumulation
    acc = jnp.zeros((Ho * Wo, Co), jnp.float32)
    for dy in range(3):
        for dx in range(3):
            patch = a[dy:dy + Ho, dx:dx + Wo, :].reshape(Ho * Wo, Cp)
            acc = acc + jnp.dot(patch.astype(jnp.bfloat16),
                                w_ref[dy * 3 + dx],
                                preferred_element_type=jnp.float32)

    y_ref[...] = acc[None]
    s = jnp.sum(acc, axis=0, keepdims=True)
    ss = jnp.sum(acc * acc, axis=0, keepdims=True)
    stats_ref[...] = jnp.concatenate([s, ss], axis=0)[None]


def _conv2_call(a1_pad, scale1, shift1, w2p):
    N, Hp2, Wp2, Cp = a1_pad.shape
    Ho, Wo = Hp2 - 2, Wp2 - 2
    return pl.pallas_call(
        _conv2_kernel,
        out_shape=(jax.ShapeDtypeStruct((N, Ho * Wo, Cp), jnp.float32),
                   jax.ShapeDtypeStruct((N, 2, Cp), jnp.float32)),
        grid=(N,),
        in_specs=[pl.BlockSpec((1, Hp2, Wp2, Cp), lambda n: (n, 0, 0, 0)),
                  pl.BlockSpec((1, 1, Cp), lambda n: (0, 0, 0)),
                  pl.BlockSpec((1, 1, Cp), lambda n: (0, 0, 0)),
                  pl.BlockSpec(w2p.shape, lambda n: (0, 0, 0))],
        out_specs=(pl.BlockSpec((1, Ho * Wo, Cp), lambda n: (n, 0, 0)),
                   pl.BlockSpec((1, 2, Cp), lambda n: (n, 0, 0))),
        compiler_params=pltpu.CompilerParams(
            dimension_semantics=("parallel",)),
    )(a1_pad, scale1, shift1, w2p)


def _finalize_kernel(y2_ref, sc_ref, s2_ref, t2_ref, ssc_ref, tsc_ref, o_ref):
    """out = relu( BN2(y2) + BN_sc(shortcut) ), all as precomputed scale/shift."""
    left = y2_ref[...] * s2_ref[...] + t2_ref[...]
    short = sc_ref[...] * ssc_ref[...] + tsc_ref[...]
    o_ref[...] = jnp.maximum(left + short, 0.0)


def _finalize_call(y2_flat, sc_flat, s2, t2, ssc, tsc):
    Mp, Cp = y2_flat.shape
    nt = Mp // TM
    return pl.pallas_call(
        _finalize_kernel,
        out_shape=jax.ShapeDtypeStruct((Mp, Cp), jnp.float32),
        grid=(nt,),
        in_specs=[pl.BlockSpec((TM, Cp), lambda i: (i, 0)),
                  pl.BlockSpec((TM, Cp), lambda i: (i, 0)),
                  pl.BlockSpec((1, Cp), lambda i: (0, 0)),
                  pl.BlockSpec((1, Cp), lambda i: (0, 0)),
                  pl.BlockSpec((1, Cp), lambda i: (0, 0)),
                  pl.BlockSpec((1, Cp), lambda i: (0, 0))],
        out_specs=pl.BlockSpec((TM, Cp), lambda i: (i, 0)),
        compiler_params=pltpu.CompilerParams(
            dimension_semantics=("parallel",)),
    )(y2_flat, sc_flat, s2, t2, ssc, tsc)


# ---------------------------------------------------------------------------
# JAX glue: BN reduction + hoisted weight packing
# ---------------------------------------------------------------------------
def _bn_scale_shift(partial_stats, count, gamma, beta):
    """partial_stats: (tiles, 2, Cp) -> per-channel (scale, shift), f32."""
    total = jnp.sum(partial_stats, axis=0)            # (2, Cp)
    mean = total[0] / count
    var = jnp.maximum(total[1] / count - mean * mean, 0.0)   # biased (training)
    scale = gamma * jax.lax.rsqrt(var + EPS)
    shift = beta - mean * scale
    return scale, shift


def prepare_params(params, inchannel, outchannel):
    """Hoisted (call once): pack / pad / bf16-cast the block's weights."""
    w1, g1, b1, w2, g2, b2, ws, gs, bs = params
    Cp = _round_up(outchannel, LANE)

    # conv1: (Cout,Cin,3,3) -> (9*Cin, Cp), row order (dy, dx, cin) matches im2col
    w1f = jnp.transpose(w1, (2, 3, 1, 0)).reshape(9 * inchannel, outchannel)
    w1f = _pad_axis(w1f, Cp, 1).astype(jnp.bfloat16)

    # conv2: (Cout,Cout,3,3) -> (9, Cp, Cp), tap-major, [k, cin, cout]
    w2p = jnp.transpose(w2, (2, 3, 1, 0)).reshape(9, outchannel, outchannel)
    w2p = _pad_axis(_pad_axis(w2p, Cp, 1), Cp, 2).astype(jnp.bfloat16)

    packed = dict(
        Cout=outchannel, Cp=Cp, w1f=w1f, w2p=w2p,
        g1=_pad_axis(g1.astype(jnp.float32), Cp, 0),
        b1=_pad_axis(b1.astype(jnp.float32), Cp, 0),
        g2=_pad_axis(g2.astype(jnp.float32), Cp, 0),
        b2=_pad_axis(b2.astype(jnp.float32), Cp, 0),
    )
    if ws is not None:
        wsf = _pad_axis(ws.reshape(outchannel, inchannel).T, Cp, 1).astype(jnp.bfloat16)
        packed.update(wsf=wsf,
                      gs=_pad_axis(gs.astype(jnp.float32), Cp, 0),
                      bs=_pad_axis(bs.astype(jnp.float32), Cp, 0))
    else:
        packed.update(wsf=None, gs=None, bs=None)
    return packed


# ---------------------------------------------------------------------------
# forward
# ---------------------------------------------------------------------------
def residual_block_forward(x_nchw, packed, stride=1):
    """Pallas implementation of ResidualBlock.forward (training-mode BatchNorm)."""
    N, Cin, H, W = x_nchw.shape
    Cout, Cp = packed["Cout"], packed["Cp"]
    x_nhwc = jnp.transpose(x_nchw, (0, 2, 3, 1)).astype(jnp.float32)

    # ---- conv1 (3x3, stride) as tiled bf16 matmul + BN1 partial stats --------
    # TODO(synk): move conv1's im2col in-kernel too (halo blocks + strided taps);
    # kept JAX-side so arbitrary stride stays simple.
    P1, (Ho, Wo) = _im2col(x_nhwc, 3, stride, 1)
    M = N * Ho * Wo
    Mp = _round_up(M, TM)
    P1 = _pad_axis(P1, Mp, 0).astype(jnp.bfloat16)      # zero rows don't bias stats
    y1, st1 = _matmul_with_stats(P1, packed["w1f"])
    scale1, shift1 = _bn_scale_shift(st1, M, packed["g1"], packed["b1"])

    # ---- conv2 (3x3, stride 1): in-kernel im2col, BN1+ReLU fused, BN2 stats ---
    a1_pad = jnp.pad(y1[:M].reshape(N, Ho, Wo, Cp),
                     ((0, 0), (1, 1), (1, 1), (0, 0)))
    y2, st2 = _conv2_call(a1_pad, scale1.reshape(1, 1, Cp),
                          shift1.reshape(1, 1, Cp), packed["w2p"])
    scale2, shift2 = _bn_scale_shift(st2, M, packed["g2"], packed["b2"])

    # ---- shortcut -------------------------------------------------------------
    if packed["wsf"] is not None:        # projection: 1x1 conv (stride) + BN
        Psc = x_nhwc[:, ::stride, ::stride, :].reshape(M, Cin)
        Psc = _pad_axis(Psc, Mp, 0).astype(jnp.bfloat16)
        sc_flat, stsc = _matmul_with_stats(Psc, packed["wsf"])
        ssc, tsc = _bn_scale_shift(stsc, M, packed["gs"], packed["bs"])
    else:                                # identity
        sc_flat = _pad_axis(_pad_axis(x_nhwc.reshape(M, Cin), Cp, 1), Mp, 0)
        ssc = jnp.ones((Cp,), jnp.float32)
        tsc = jnp.zeros((Cp,), jnp.float32)

    # ---- BN2 + shortcut BN + add + ReLU (tiled, lane-dense output) ------------
    y2_flat = _pad_axis(y2.reshape(M, Cp), Mp, 0)
    out = _finalize_call(y2_flat, sc_flat,
                         scale2.reshape(1, Cp), shift2.reshape(1, Cp),
                         ssc.reshape(1, Cp), tsc.reshape(1, Cp))
    out = out[:M, :Cout].reshape(N, Ho, Wo, Cout)
    return jnp.transpose(out, (0, 3, 1, 2))


# ---------------------------------------------------------------------------
# Pure-JAX reference (mirrors the PyTorch forward, training-mode BN)
# ---------------------------------------------------------------------------
def _conv_ref(x, w, stride, pad):
    return jax.lax.conv_general_dilated(
        x, w, (stride, stride), ((pad, pad), (pad, pad)),
        dimension_numbers=("NCHW", "OIHW", "NCHW"),
        precision=jax.lax.Precision.HIGHEST)


def _bn_ref(x, g, b):
    mu = x.mean(axis=(0, 2, 3), keepdims=True)
    var = ((x - mu) ** 2).mean(axis=(0, 2, 3), keepdims=True)
    return (g.reshape(1, -1, 1, 1) * (x - mu) / jnp.sqrt(var + EPS)
            + b.reshape(1, -1, 1, 1))


def residual_block_ref(x, params, stride=1):
    w1, g1, b1, w2, g2, b2, ws, gs, bs = params
    out = jnp.maximum(_bn_ref(_conv_ref(x, w1, stride, 1), g1, b1), 0.0)
    out = _bn_ref(_conv_ref(out, w2, 1, 1), g2, b2)
    short = _bn_ref(_conv_ref(x, ws, stride, 0), gs, bs) if ws is not None else x
    return jnp.maximum(out + short, 0.0)


# ---------------------------------------------------------------------------
if __name__ == "__main__":
    key = jax.random.PRNGKey(0)
    N, H, W = 2, 16, 16

    def make_params(k, cin, cout, proj):
        k1, k2, k3, k4, k5 = jax.random.split(k, 5)
        w1 = 0.1 * jax.random.normal(k1, (cout, cin, 3, 3), jnp.float32)
        w2 = 0.1 * jax.random.normal(k2, (cout, cout, 3, 3), jnp.float32)
        g1 = 1.0 + 0.1 * jax.random.normal(k4, (cout,), jnp.float32)
        b1 = 0.1 * jax.random.normal(k5, (cout,), jnp.float32)
        g2 = 1.0 - 0.1 * jax.random.normal(k4, (cout,), jnp.float32)
        b2 = -0.1 * jax.random.normal(k5, (cout,), jnp.float32)
        if proj:
            ws = 0.1 * jax.random.normal(k3, (cout, cin, 1, 1), jnp.float32)
            gs = jnp.ones((cout,), jnp.float32)
            bs = jnp.zeros((cout,), jnp.float32)
        else:
            ws = gs = bs = None
        return (w1, g1, b1, w2, g2, b2, ws, gs, bs)

    configs = [
        (4, 8, 1),   # projection shortcut (channel change)
        (8, 8, 1),   # identity shortcut
        (4, 8, 2),   # projection shortcut with stride 2
    ]

    for idx, (cin, cout, stride) in enumerate(configs):
        kx, kp, key = jax.random.split(key, 3)
        x = jax.random.normal(kx, (N, cin, H, W), jnp.float32)
        proj = (stride != 1) or (cin != cout)
        params = make_params(kp, cin, cout, proj)
        packed = prepare_params(params, cin, cout)

        out = jax.block_until_ready(residual_block_forward(x, packed, stride=stride))
        ref = jax.block_until_ready(residual_block_ref(x, params, stride=stride))

        assert out.shape == ref.shape, (out.shape, ref.shape)
        max_err = float(jnp.max(jnp.abs(out - ref)))
        if max_err > 5e-2:
            raise RuntimeError(
                f"config {idx} (cin={cin}, cout={cout}, stride={stride}): "
                f"mismatch vs reference, max abs err = {max_err}")

    print("KERNEL_OK")
</pallas_src>

<mosaic_0001>
module attributes {stable_mosaic.version = 11 : i64} {
  func.func @_matmul_stats_kernel(%arg0: i32, %arg1: memref<256x36xbf16, #tpu.memory_space<vmem>>, %arg2: memref<36x128xbf16, #tpu.memory_space<vmem>>, %arg3: memref<256x128xf32, #tpu.memory_space<vmem>>, %arg4: memref<1x2x128xf32, #tpu.memory_space<vmem>>) attributes {dimension_semantics = [#tpu.dimension_semantics<parallel>], iteration_bounds = array<i64: 2>, scalar_prefetch = 0 : i64, scratch_operands = 0 : i64, tpu.core_type = #tpu.core_type<tc>, window_params = [{transform_indices = @transform_0, window_bounds = array<i64: 256, 36>}, {pipeline_mode = #tpu.pipeline_mode<synchronous>, transform_indices = @transform_1, window_bounds = array<i64: 36, 128>}, {transform_indices = @transform_2, window_bounds = array<i64: 256, 128>}, {transform_indices = @transform_3, window_bounds = array<i64: 1, 2, 128>}]} {
    %c0 = arith.constant 0 : index
    %c0_0 = arith.constant 0 : index
    %0 = vector.load %arg1[%c0, %c0_0] : memref<256x36xbf16, #tpu.memory_space<vmem>>, vector<256x36xbf16>
    %c0_1 = arith.constant 0 : index
    %c0_2 = arith.constant 0 : index
    %1 = vector.load %arg2[%c0_1, %c0_2] : memref<36x128xbf16, #tpu.memory_space<vmem>>, vector<36x128xbf16>
    %cst = arith.constant dense<0.000000e+00> : vector<256x128xf32>
    %2 = tpu.matmul %0, %1, %cst {dimension_numbers = #tpu.dot_dimension_numbers<[1], [0], [0], [1], [0, 0, 1, 1], [], []>} : vector<256x36xbf16>, vector<36x128xbf16>, vector<256x128xf32> -> vector<256x128xf32>
    %c0_3 = arith.constant 0 : index
    %c0_4 = arith.constant 0 : index
    %3 = vector.load %arg3[%c0_3, %c0_4] : memref<256x128xf32, #tpu.memory_space<vmem>>, vector<256x128xf32>
    tpu.vector_store %arg3[%c0_3, %c0_4], %2 {strides = array<i32>} : memref<256x128xf32, #tpu.memory_space<vmem>>, vector<256x128xf32>,
    %cst_5 = arith.constant dense<0.000000e+00> : vector<128xf32>
    %4 = vector.multi_reduction <add>, %2, %cst_5 [0] : vector<256x128xf32> to vector<128xf32>
    %5 = vector.shape_cast %4 : vector<128xf32> to vector<1x128xf32>
    %6 = arith.mulf %2, %2 : vector<256x128xf32>
    %cst_6 = arith.constant dense<0.000000e+00> : vector<128xf32>
    %7 = vector.multi_reduction <add>, %6, %cst_6 [0] : vector<256x128xf32> to vector<128xf32>
    %8 = vector.shape_cast %7 : vector<128xf32> to vector<1x128xf32>
    %9 = tpu.concatenate %5, %8 in 0 : vector<1x128xf32>, vector<1x128xf32> -> vector<2x128xf32>
    %10 = vector.shape_cast %9 : vector<2x128xf32> to vector<1x2x128xf32>
    %c0_7 = arith.constant 0 : index
    %c0_8 = arith.constant 0 : index
    %c0_9 = arith.constant 0 : index
    %11 = vector.load %arg4[%c0_7, %c0_8, %c0_9] : memref<1x2x128xf32, #tpu.memory_space<vmem>>, vector<1x2x128xf32>
    tpu.vector_store %arg4[%c0_7, %c0_8, %c0_9], %10 {strides = array<i32>} : memref<1x2x128xf32, #tpu.memory_space<vmem>>, vector<1x2x128xf32>,
    return
  }
  func.func @transform_0(%arg0: i32) -> (i32, i32) {
    %c0_i32 = arith.constant 0 : i32
    %c0_i32_0 = arith.constant 0 : i32
    return %arg0, %c0_i32 : i32, i32
  }
  func.func @transform_1(%arg0: i32) -> (i32, i32) {
    %c0_i32 = arith.constant 0 : i32
    %c0_i32_0 = arith.constant 0 : i32
    %c0_i32_1 = arith.constant 0 : i32
    return %c0_i32, %c0_i32_0 : i32, i32
  }
  func.func @transform_2(%arg0: i32) -> (i32, i32) {
    %c0_i32 = arith.constant 0 : i32
    %c0_i32_0 = arith.constant 0 : i32
    return %arg0, %c0_i32 : i32, i32
  }
  func.func @transform_3(%arg0: i32) -> (i32, i32, i32) {
    %c0_i32 = arith.constant 0 : i32
    %c0_i32_0 = arith.constant 0 : i32
    %c0_i32_1 = arith.constant 0 : i32
    return %arg0, %c0_i32, %c0_i32_0 : i32, i32, i32
  }
}

</mosaic_0001>

<llo_original>
// kernel: tpu_custom_call.1
$region0: #{tpu_custom_call.1}
  #allocation0 [shape = 'u32[]', space=smem, size = 0x4, offset = 0x4, fixed_abs, tag = 'smem constant byte address 0x4 - core index']
  #allocation1 [shape = 'u32[72,128]{1,0:T(1,128)}', space=vmem, size = 0x9000, scoped, tag = 'internal scratch']
  %s0 = inlined_call_operand.vmem [shape: bf16[512,36], index: 0, kind: input, shape index: {}]
  %s1 = inlined_call_operand.vmem [shape: bf16[36,128], index: 1, kind: input, shape index: {}]
  %s2 = inlined_call_operand.hbm [shape: f32[512,128], index: 2, kind: output, shape index: {0}]
  %s3 = inlined_call_operand.hbm [shape: f32[2,2,128], index: 3, kind: output, shape index: {1}]
  %4 = xla_tuple %s2, %s3
  %s5 = sld [smem:[#allocation0]]
  $region49: #{tpu_custom_call.1} parent=0
    _
  %s7 = ssub.s32 1, %s5
  %s8 = scalar_select 0, %s7, %s5
  $region1: #{tpu_custom_call.1} parent=0
    #allocation2 [shape = 'u8[262144]{0}', space=vmem, size = 0x40000, scoped, tag = 'output window, operand 0']
    #allocation3 [shape = 's32[2]{0}', space=sflag, size = 0x8, scoped, tag = 'scoped memory for tpu_custom_call.1']
    #allocation4 [shape = 'u8[2048]{0}', space=vmem, size = 0x800, scoped, tag = 'output window, operand 1']
    #allocation5 [shape = 's32[2]{0}', space=sflag, size = 0x8, scoped, tag = 'scoped memory for tpu_custom_call.1']
    %9 = vsyncpa [#allocation3], 0
    %s10 = scalar_lea.sflag [#allocation3], 1
    %11 = vsyncpa %s10, 0
    %12 = vsyncpa [#allocation5], 0
    %s13 = scalar_lea.sflag [#allocation5], 1
    %14 = vsyncpa %s13, 0
    loop: start=0, step=1, limit=4
    $region2: #{tpu_custom_call.1} parent=1 // loop_pre_header
      _
    $region3: #{tpu_custom_call.1} parent=1 // loop_header
      %s16 = sphi 0, %s20
      %p17 = scmp.ge.s32.totalorder %s16, 4
      %s26 = sphi 0, %s28
      %s29 = sphi 0, %s26
      %s30 = sphi 0, %s29
      %s46 = sphi 0, %s30
      %s50 = sphi 0, %s50
      %s52 = sphi 0, %s50
      %s53 = sphi 0, %s52
      %s67 = sphi 0, %s53
      %s73 = sphi 0, %s75
      %s76 = sphi 0, %s73
      %s77 = sphi 0, %s76
      %s93 = sphi 0, %s77
      %s99 = sphi 0, %s101
      %s102 = sphi 0, %s99
      %s103 = sphi 0, %s102
      %s119 = sphi 0, %s103
    $region4: #{tpu_custom_call.1} parent=1 // loop_header_branch
      %19 = sbr.rel (%p17) target = $region8
    $region5: #{tpu_custom_call.1} parent=1 // loop_body
      %s21 = ssub.s32 %s16, 1
      %s22 = ssub.s32 %s16, 2
      %s23 = sadd.s32 %s16, 1
      %s24 = ssub.s32 %s16, %s23
      %p25 = scmp.eq.s32.totalorder %s24, 0
      %s27 = sadd.s32 %s26, 1
      %s28 = scalar_select %p25, %s26, %s27
      %p31 = pneg %p25
      %p32 = scmp.eq.s32.totalorder %s16, 1
      %p33 = por %p31, %p32
      %p34 = scmp.ne.s32.totalorder %s26, %s29
      %p35 = scmp.eq.s32.totalorder %s16, 0
      %p36 = por %p34, %p35
      %p37 = scmp.ne.s32.totalorder %s26, %s29
      %p38 = scmp.eq.s32.totalorder %s21, 1
      %p39 = por %p37, %p38
      %p40 = scmp.ne.s32.totalorder %s29, %s30
      %p41 = scmp.eq.s32.totalorder %s21, 0
      %p42 = por %p40, %p41
      %p43 = scmp.ne.s32.totalorder %s29, %s30
      %p44 = scmp.eq.s32.totalorder %s22, 1
      %p45 = por %p43, %p44
      %p47 = scmp.ne.s32.totalorder %s30, %s46
      %p48 = scmp.eq.s32.totalorder %s22, 0
      %p49 = por %p47, %p48
      %s51 = sadd.s32 %s50, 1
      %p54 = scmp.eq.s32.totalorder %s16, 1
      %p55 = scmp.ne.s32.totalorder %s50, %s52
      %p56 = scmp.eq.s32.totalorder %s16, 0
      %p57 = por %p55, %p56
      %p58 = scmp.ne.s32.totalorder %s50, %s52
      %p59 = scmp.eq.s32.totalorder %s21, 1
      %p60 = por %p58, %p59
      %p61 = scmp.ne.s32.totalorder %s52, %s53
      %p62 = scmp.eq.s32.totalorder %s21, 0
      %p63 = por %p61, %p62
      %p64 = scmp.ne.s32.totalorder %s52, %s53
      %p65 = scmp.eq.s32.totalorder %s22, 1
      %p66 = por %p64, %p65
      %p68 = scmp.ne.s32.totalorder %s53, %s67
      %p69 = scmp.eq.s32.totalorder %s22, 0
      %p70 = por %p68, %p69
      %s71 = ssub.s32 %s16, %s23
      %p72 = scmp.eq.s32.totalorder %s71, 0
      %s74 = sadd.s32 %s73, 1
      %s75 = scalar_select %p72, %s73, %s74
      %p78 = pneg %p72
      %p79 = scmp.eq.s32.totalorder %s16, 1
      %p80 = por %p78, %p79
      %p81 = scmp.ne.s32.totalorder %s73, %s76
      %p82 = scmp.eq.s32.totalorder %s16, 0
      %p83 = por %p81, %p82
      %p84 = scmp.ne.s32.totalorder %s73, %s76
      %p85 = scmp.eq.s32.totalorder %s21, 1
      %p86 = por %p84, %p85
      %p87 = scmp.ne.s32.totalorder %s76, %s77
      %p88 = scmp.eq.s32.totalorder %s21, 0
      %p89 = por %p87, %p88
      %p90 = scmp.ne.s32.totalorder %s76, %s77
      %p91 = scmp.eq.s32.totalorder %s22, 1
      %p92 = por %p90, %p91
      %p94 = scmp.ne.s32.totalorder %s77, %s93
      %p95 = scmp.eq.s32.totalorder %s22, 0
      %p96 = por %p94, %p95
      %s97 = ssub.s32 %s16, %s23
      %p98 = scmp.eq.s32.totalorder %s97, 0
      %s100 = sadd.s32 %s99, 1
      %s101 = scalar_select %p98, %s99, %s100
      %p104 = pneg %p98
      %p105 = scmp.eq.s32.totalorder %s16, 1
      %p106 = por %p104, %p105
      %p107 = scmp.ne.s32.totalorder %s99, %s102
      %p108 = scmp.eq.s32.totalorder %s16, 0
      %p109 = por %p107, %p108
      %p110 = scmp.ne.s32.totalorder %s99, %s102
      %p111 = scmp.eq.s32.totalorder %s21, 1
      %p112 = por %p110, %p111
      %p113 = scmp.ne.s32.totalorder %s102, %s103
      %p114 = scmp.eq.s32.totalorder %s21, 0
      %p115 = por %p113, %p114
      %p116 = scmp.ne.s32.totalorder %s102, %s103
      %p117 = scmp.eq.s32.totalorder %s22, 1
      %p118 = por %p116, %p117
      %p120 = scmp.ne.s32.totalorder %s103, %s119
      %p121 = scmp.eq.s32.totalorder %s22, 0
      %p122 = por %p120, %p121
      %p123 = scmp.le.s32.totalorder 1, %s16
      %p124 = scmp.lt.s32.totalorder %s16, 3
      %p125 = pnand %p123, %p124
      %p126 = pneg %p125
      // Predicated region
      $region9: #{tpu_custom_call.1} parent=5 // pred_check
        _
      $region10: #{tpu_custom_call.1} parent=5 // pred_check_branch
        %128 = sbr.rel (%p125) target = $region12
      $region11: #{tpu_custom_call.1} parent=5 // pred_region
        %s129 = ssub.s32 %s16, 1
        // Predicated region
        $region13: #{tpu_custom_call.1} parent=11 // pred_check
          %p130 = pneg %p63
        $region14: #{tpu_custom_call.1} parent=11 // pred_check_branch
          %132 = sbr.rel (%p130) target = $region16
        $region15: #{tpu_custom_call.1} parent=11 // pred_region
          _
        $region16: #{tpu_custom_call.1} parent=11 // pred_fallthru
          _
      $region12: #{tpu_custom_call.1} parent=5 // pred_fallthru
        _
      %p133 = scmp.lt.s32.totalorder %s16, 2
      // Predicated region
      $region17: #{tpu_custom_call.1} parent=5 // pred_check
        %p134 = pneg %p133
      $region18: #{tpu_custom_call.1} parent=5 // pred_check_branch
        %136 = sbr.rel (%p134) target = $region20
      $region19: #{tpu_custom_call.1} parent=5 // pred_region
        // Predicated region
        $region21: #{tpu_custom_call.1} parent=19 // pred_check
          %p137 = pneg %p36
        $region22: #{tpu_custom_call.1} parent=19 // pred_check_branch
          %139 = sbr.rel (%p137) target = $region24
        $region23: #{tpu_custom_call.1} parent=19 // pred_region
          %s140 = smul.u32 32, %s16
          %p141 = scmp.lt.s32.totalorder %s140, 63
          %s142 = scalar_select %p141, %s140, 63
          %s143 = smul.addr %s142, 4
          %s144 = scalar_lea.vmem %s0, %s143
          %s145 = smul.u32 32, %s16
        $region24: #{tpu_custom_call.1} parent=19 // pred_fallthru
          _
      $region20: #{tpu_custom_call.1} parent=5 // pred_fallthru
        _
      %p146 = scmp.le.s32.totalorder 1, %s16
      %p147 = scmp.lt.s32.totalorder %s16, 3
      %p148 = pnand %p146, %p147
      %p149 = pneg %p148
      // Predicated region
      $region25: #{tpu_custom_call.1} parent=5 // pred_check
        _
      $region26: #{tpu_custom_call.1} parent=5 // pred_check_branch
        %151 = sbr.rel (%p148) target = $region28
      $region27: #{tpu_custom_call.1} parent=5 // pred_region
        %s152 = ssub.s32 %s16, 1
        %s153 = smul.u32 32, %s21
        %p154 = scmp.lt.s32.totalorder %s153, 63
        %s155 = scalar_select %p154, %s153, 63
        %s156 = smul.addr %s155, 4
        %s157 = scalar_lea.vmem %s0, %s156
        %p158 = pneg %p42
        %p159 = pneg %p39
        %p160 = pneg %p63
        %p161 = pneg %p60
        %p162 = pneg %p89
        %p163 = pneg %p86
        %s164 = sand.u32 %s76, 1
        %s165 = scalar_lea.sflag [#allocation3], %s164
        %s166 = sand.u32 %s76, 1
        %s167 = smul.addr %s166, 256
        %s168 = scalar_lea.vmem [#allocation2], %s167
        %p169 = pneg %p115
        %p170 = pneg %p112
        %s171 = sand.u32 %s102, 1
        %s172 = scalar_lea.sflag [#allocation5], %s171
        %s173 = sand.u32 %s102, 1
        %s174 = smul.addr %s173, 2
        %s175 = scalar_lea.vmem [#allocation4], %s174
        %s176 = smul.u32 32, %s21
        %p177 = scmp.lt.s32.totalorder %s176, 63
        %s178 = scalar_select %p177, %s176, 63
        %s179 = smul.addr %s178, 4
        %s180 = scalar_lea.vmem %s0, %s179
        %s181 = smul.u32 32, %s21
        %s182 = smul.u32 32, %s21
        %v184 = vld [vmem:[%s180] sm:$0xf]
        %v185 = vld [vmem:[%s180 + $0x4] sm:$0xf]
        %v186 = vld [vmem:[%s180 + $0x8] sm:$0xf]
        %v187 = vld [vmem:[%s180 + $0xc] sm:$0xf]
        %v188 = vld [vmem:[%s180 + $0x10] sm:$0xf]
        %v189 = vld [vmem:[%s180 + $0x14] sm:$0xf]
        %v190 = vld [vmem:[%s180 + $0x18] sm:$0xf]
        %v191 = vld [vmem:[%s180 + $0x1c] sm:$0xf]
        %v192 = vld [vmem:[%s180 + $0x20] sm:$0xf]
        %v193 = vld [vmem:[%s180 + $0x24] sm:$0xf]
        %v194 = vld [vmem:[%s180 + $0x28] sm:$0xf]
        %v195 = vld [vmem:[%s180 + $0x2c] sm:$0xf]
        %v196 = vld [vmem:[%s180 + $0x30] sm:$0xf]
        %v197 = vld [vmem:[%s180 + $0x34] sm:$0xf]
        %v198 = vld [vmem:[%s180 + $0x38] sm:$0xf]
        %v199 = vld [vmem:[%s180 + $0x3c] sm:$0xf]
        %v200 = vld [vmem:[%s180 + $0x40] sm:$0xf]
        %v201 = vld [vmem:[%s180 + $0x44] sm:$0xf]
        %v202 = vld [vmem:[%s180 + $0x48] sm:$0xf]
        %v203 = vld [vmem:[%s180 + $0x4c] sm:$0xf]
        %v204 = vld [vmem:[%s180 + $0x50] sm:$0xf]
        %v205 = vld [vmem:[%s180 + $0x54] sm:$0xf]
        %v206 = vld [vmem:[%s180 + $0x58] sm:$0xf]
        %v207 = vld [vmem:[%s180 + $0x5c] sm:$0xf]
        %v208 = vld [vmem:[%s180 + $0x60] sm:$0xf]
        %v209 = vld [vmem:[%s180 + $0x64] sm:$0xf]
        %v210 = vld [vmem:[%s180 + $0x68] sm:$0xf]
        %v211 = vld [vmem:[%s180 + $0x6c] sm:$0xf]
        %v212 = vld [vmem:[%s180 + $0x70] sm:$0xf]
        %v213 = vld [vmem:[%s180 + $0x74] sm:$0xf]
        %v214 = vld [vmem:[%s180 + $0x78] sm:$0xf]
        %v215 = vld [vmem:[%s180 + $0x7c] sm:$0xf]
        %v216 = vld [vmem:[%s1] sm:$0xf]
        %v217 = vld [vmem:[%s1 + $0x4] sm:$0xf]
        %v218 = vld [vmem:[%s1 + $0x8] sm:$0xf]
        %v219 = vld [vmem:[%s1 + $0xc] sm:$0xf]
        %v220 = vld [vmem:[%s1 + $0x10] sm:$0x3]
        %v253 = vunpack.c.l.b16 %v184
        %v254 = vunpack.c.l.b16 %v185
        %v255 = vunpack.c.l.b16 %v186
        %v256 = vunpack.c.l.b16 %v187
        %v257 = vunpack.c.l.b16 %v188
        %v258 = vunpack.c.l.b16 %v189
        %v259 = vunpack.c.l.b16 %v190
        %v260 = vunpack.c.l.b16 %v191
        %v261 = vunpack.c.l.b16 %v192
        %v262 = vunpack.c.l.b16 %v193
        %v263 = vunpack.c.l.b16 %v194
        %v264 = vunpack.c.l.b16 %v195
        %v265 = vunpack.c.l.b16 %v196
        %v266 = vunpack.c.l.b16 %v197
        %v267 = vunpack.c.l.b16 %v198
        %v268 = vunpack.c.l.b16 %v199
        %v269 = vunpack.c.l.b16 %v200
        %v270 = vunpack.c.l.b16 %v201
        %v271 = vunpack.c.l.b16 %v202
        %v272 = vunpack.c.l.b16 %v203
        %v273 = vunpack.c.l.b16 %v204
        %v274 = vunpack.c.l.b16 %v205
        %v275 = vunpack.c.l.b16 %v206
        %v276 = vunpack.c.l.b16 %v207
        %v277 = vunpack.c.l.b16 %v208
        %v278 = vunpack.c.l.b16 %v209
        %v279 = vunpack.c.l.b16 %v210
        %v280 = vunpack.c.l.b16 %v211
        %v281 = vunpack.c.l.b16 %v212
        %v282 = vunpack.c.l.b16 %v213
        %v283 = vunpack.c.l.b16 %v214
        %v284 = vunpack.c.l.b16 %v215
        %v285 = vpack.c.b16 %v254, %v253
        %v286 = vpack.c.b16 %v256, %v255
        %v287 = vpack.c.b16 %v258, %v257
        %v288 = vpack.c.b16 %v260, %v259
        %v289 = vpack.c.b16 %v262, %v261
        %v290 = vpack.c.b16 %v264, %v263
        %v291 = vpack.c.b16 %v266, %v265
        %v292 = vpack.c.b16 %v268, %v267
        %v293 = vpack.c.b16 %v270, %v269
        %v294 = vpack.c.b16 %v272, %v271
        %v295 = vpack.c.b16 %v274, %v273
        %v296 = vpack.c.b16 %v276, %v275
        %v297 = vpack.c.b16 %v278, %v277
        %v298 = vpack.c.b16 %v280, %v279
        %v299 = vpack.c.b16 %v282, %v281
        %v300 = vpack.c.b16 %v284, %v283
        %v306 = vunpack.c.l.b16 %v216
        %v307 = vunpack.c.l.b16 %v217
        %v308 = vunpack.c.l.b16 %v218
        %v309 = vunpack.c.l.b16 %v219
        %v310 = vunpack.c.l.b16 %v220
        %v311 = vpack.c.b16 %v307, %v306
        %v312 = vpack.c.b16 %v309, %v308
        %v313 = vpack.c.b16 %v310, %v310
        %vm316 = vcmask 293888
        %v318 = vsel %vm316, %v285, 0
        %v321 = vsel %vm316, %v286, 0
        %v324 = vsel %vm316, %v287, 0
        %v327 = vsel %vm316, %v288, 0
        %v330 = vsel %vm316, %v289, 0
        %v333 = vsel %vm316, %v290, 0
        %v336 = vsel %vm316, %v291, 0
        %v339 = vsel %vm316, %v292, 0
        %v342 = vsel %vm316, %v293, 0
        %v345 = vsel %vm316, %v294, 0
        %v348 = vsel %vm316, %v295, 0
        %v351 = vsel %vm316, %v296, 0
        %v354 = vsel %vm316, %v297, 0
        %v357 = vsel %vm316, %v298, 0
        %v360 = vsel %vm316, %v299, 0
        %v363 = vsel %vm316, %v300, 0
        %vm365 = vcmask 1041408
        %v367 = vsel %vm365, %v313, 0
        %369 = vmatpush.bf16.msra.mxu0 0
        %370 = vmatpush.bf16.msra.mxu0 0
        %371 = vmatpush.bf16.msra.mxu0 0
        %372 = vmatpush.bf16.msra.mxu0 0
        %373 = vmatpush.bf16.msra.mxu0 0
        %374 = vmatpush.bf16.msra.mxu0 %v367
        %375 = vmatpush.bf16.msra.mxu0 %v312
        %376 = vmatpush.bf16.msra.mxu0 %v311
        %377 = vmatmul.bf16.gmra.mxu0 %v318
        %v378 = vpop.f32.mrf.mxu0
        %v379 = vadd.f32 0.0, %v378
        %v380 = vpop.f32.mrf.mxu0
        %v381 = vadd.f32 0.0, %v380
        %382 = vmatmul.bf16.gmra.mxu0 %v321
        %v383 = vpop.f32.mrf.mxu0
        %v384 = vadd.f32 0.0, %v383
        %v385 = vpop.f32.mrf.mxu0
        %v386 = vadd.f32 0.0, %v385
        %387 = vmatmul.bf16.gmra.mxu0 %v324
        %v388 = vpop.f32.mrf.mxu0
        %v389 = vadd.f32 0.0, %v388
        %v390 = vpop.f32.mrf.mxu0
        %v391 = vadd.f32 0.0, %v390
        %392 = vmatmul.bf16.gmra.mxu0 %v327
        %v393 = vpop.f32.mrf.mxu0
        %v394 = vadd.f32 0.0, %v393
        %v395 = vpop.f32.mrf.mxu0
        %v396 = vadd.f32 0.0, %v395
        %397 = vmatmul.bf16.gmra.mxu0 %v330
        %v398 = vpop.f32.mrf.mxu0
        %v399 = vadd.f32 0.0, %v398
        %v400 = vpop.f32.mrf.mxu0
        %v401 = vadd.f32 0.0, %v400
        %402 = vmatmul.bf16.gmra.mxu0 %v333
        %v403 = vpop.f32.mrf.mxu0
        %v404 = vadd.f32 0.0, %v403
        %v405 = vpop.f32.mrf.mxu0
        %v406 = vadd.f32 0.0, %v405
        %407 = vmatmul.bf16.gmra.mxu0 %v336
        %v408 = vpop.f32.mrf.mxu0
        %v409 = vadd.f32 0.0, %v408
        %v410 = vpop.f32.mrf.mxu0
        %v411 = vadd.f32 0.0, %v410
        %412 = vmatmul.bf16.gmra.mxu0 %v339
        %v413 = vpop.f32.mrf.mxu0
        %v414 = vadd.f32 0.0, %v413
        %v415 = vpop.f32.mrf.mxu0
        %v416 = vadd.f32 0.0, %v415
        %417 = vmatmul.bf16.gmra.mxu0 %v342
        %v418 = vpop.f32.mrf.mxu0
        %v419 = vadd.f32 0.0, %v418
        %v420 = vpop.f32.mrf.mxu0
        %v421 = vadd.f32 0.0, %v420
        %422 = vmatmul.bf16.gmra.mxu0 %v345
        %v423 = vpop.f32.mrf.mxu0
        %v424 = vadd.f32 0.0, %v423
        %v425 = vpop.f32.mrf.mxu0
        %v426 = vadd.f32 0.0, %v425
        %427 = vmatmul.bf16.gmra.mxu0 %v348
        %v428 = vpop.f32.mrf.mxu0
        %v429 = vadd.f32 0.0, %v428
        %v430 = vpop.f32.mrf.mxu0
        %v431 = vadd.f32 0.0, %v430
        %432 = vmatmul.bf16.gmra.mxu0 %v351
        %v433 = vpop.f32.mrf.mxu0
        %v434 = vadd.f32 0.0, %v433
        %v435 = vpop.f32.mrf.mxu0
        %v436 = vadd.f32 0.0, %v435
        %437 = vmatmul.bf16.gmra.mxu0 %v354
        %v438 = vpop.f32.mrf.mxu0
        %v439 = vadd.f32 0.0, %v438
        %v440 = vpop.f32.mrf.mxu0
        %v441 = vadd.f32 0.0, %v440
        %442 = vmatmul.bf16.gmra.mxu0 %v357
        %v443 = vpop.f32.mrf.mxu0
        %v444 = vadd.f32 0.0, %v443
        %v445 = vpop.f32.mrf.mxu0
        %v446 = vadd.f32 0.0, %v445
        %447 = vmatmul.bf16.gmra.mxu0 %v360
        %v448 = vpop.f32.mrf.mxu0
        %v449 = vadd.f32 0.0, %v448
        %v450 = vpop.f32.mrf.mxu0
        %v451 = vadd.f32 0.0, %v450
        %452 = vmatmul.bf16.gmra.mxu0 %v363
        %v453 = vpop.f32.mrf.mxu0
        %v454 = vadd.f32 0.0, %v453
        %v455 = vpop.f32.mrf.mxu0
        %v456 = vadd.f32 0.0, %v455
        %457 = vdwg.mxu0
        %458 = vst [vmem:[%s168] sm:$0xff] %v379
        %459 = vst [vmem:[%s168 + $0x8] sm:$0xff] %v381
        %460 = vst [vmem:[%s168 + $0x10] sm:$0xff] %v384
        %461 = vst [vmem:[%s168 + $0x18] sm:$0xff] %v386
        %462 = vst [vmem:[%s168 + $0x20] sm:$0xff] %v389
        %463 = vst [vmem:[%s168 + $0x28] sm:$0xff] %v391
        %464 = vst [vmem:[%s168 + $0x30] sm:$0xff] %v394
        %465 = vst [vmem:[%s168 + $0x38] sm:$0xff] %v396
        %466 = vst [vmem:[%s168 + $0x40] sm:$0xff] %v399
        %467 = vst [vmem:[%s168 + $0x48] sm:$0xff] %v401
        %468 = vst [vmem:[%s168 + $0x50] sm:$0xff] %v404
        %469 = vst [vmem:[%s168 + $0x58] sm:$0xff] %v406
        %470 = vst [vmem:[%s168 + $0x60] sm:$0xff] %v409
        %471 = vst [vmem:[%s168 + $0x68] sm:$0xff] %v411
        %472 = vst [vmem:[%s168 + $0x70] sm:$0xff] %v414
        %473 = vst [vmem:[%s168 + $0x78] sm:$0xff] %v416
        %474 = vst [vmem:[%s168 + $0x80] sm:$0xff] %v419
        %475 = vst [vmem:[%s168 + $0x88] sm:$0xff] %v421
        %476 = vst [vmem:[%s168 + $0x90] sm:$0xff] %v424
        %477 = vst [vmem:[%s168 + $0x98] sm:$0xff] %v426
        %478 = vst [vmem:[%s168 + $0xa0] sm:$0xff] %v429
        %479 = vst [vmem:[%s168 + $0xa8] sm:$0xff] %v431
        %480 = vst [vmem:[%s168 + $0xb0] sm:$0xff] %v434
        %481 = vst [vmem:[%s168 + $0xb8] sm:$0xff] %v436
        %482 = vst [vmem:[%s168 + $0xc0] sm:$0xff] %v439
        %483 = vst [vmem:[%s168 + $0xc8] sm:$0xff] %v441
        %484 = vst [vmem:[%s168 + $0xd0] sm:$0xff] %v444
        %485 = vst [vmem:[%s168 + $0xd8] sm:$0xff] %v446
        %486 = vst [vmem:[%s168 + $0xe0] sm:$0xff] %v449
        %487 = vst [vmem:[%s168 + $0xe8] sm:$0xff] %v451
        %488 = vst [vmem:[%s168 + $0xf0] sm:$0xff] %v454
        %489 = vst [vmem:[%s168 + $0xf8] sm:$0xff] %v456
        %v490 = vadd.f32 %v379, %v381
        %v491 = vadd.f32 %v490, %v384
        %v492 = vadd.f32 %v491, %v386
        %v493 = vadd.f32 %v492, %v389
        %v494 = vadd.f32 %v493, %v391
        %v495 = vadd.f32 %v494, %v394
        %v496 = vadd.f32 %v495, %v396
        %v497 = vadd.f32 %v496, %v399
        %v498 = vadd.f32 %v497, %v401
        %v499 = vadd.f32 %v498, %v404
        %v500 = vadd.f32 %v499, %v406
        %v501 = vadd.f32 %v500, %v409
        %v502 = vadd.f32 %v501, %v411
        %v503 = vadd.f32 %v502, %v414
        %v504 = vadd.f32 %v503, %v416
        %v505 = vadd.f32 %v504, %v419
        %v506 = vadd.f32 %v505, %v421
        %v507 = vadd.f32 %v506, %v424
        %v508 = vadd.f32 %v507, %v426
        %v509 = vadd.f32 %v508, %v429
        %v510 = vadd.f32 %v509, %v431
        %v511 = vadd.f32 %v510, %v434
        %v512 = vadd.f32 %v511, %v436
        %v513 = vadd.f32 %v512, %v439
        %v514 = vadd.f32 %v513, %v441
        %v515 = vadd.f32 %v514, %v444
        %v516 = vadd.f32 %v515, %v446
        %v517 = vadd.f32 %v516, %v449
        %v518 = vadd.f32 %v517, %v451
        %v519 = vadd.f32 %v518, %v454
        %v520 = vadd.f32 %v519, %v456
        %v521 = vrot.slane %v520, 4
        %v522 = vadd.f32 %v520, %v521
        %v523 = vrot.slane %v522, 2
        %v524 = vadd.f32 %v522, %v523
        %v525 = vrot.slane %v524, 1
        %v526 = vadd.f32 %v524, %v525
        %v527 = vmul.f32 %v379, %v379
        %v528 = vmul.f32 %v381, %v381
        %v529 = vmul.f32 %v384, %v384
        %v530 = vmul.f32 %v386, %v386
        %v531 = vmul.f32 %v389, %v389
        %v532 = vmul.f32 %v391, %v391
        %v533 = vmul.f32 %v394, %v394
        %v534 = vmul.f32 %v396, %v396
        %v535 = vmul.f32 %v399, %v399
        %v536 = vmul.f32 %v401, %v401
        %v537 = vmul.f32 %v404, %v404
        %v538 = vmul.f32 %v406, %v406
        %v539 = vmul.f32 %v409, %v409
        %v540 = vmul.f32 %v411, %v411
        %v541 = vmul.f32 %v414, %v414
        %v542 = vmul.f32 %v416, %v416
        %v543 = vmul.f32 %v419, %v419
        %v544 = vmul.f32 %v421, %v421
        %v545 = vmul.f32 %v424, %v424
        %v546 = vmul.f32 %v426, %v426
        %v547 = vmul.f32 %v429, %v429
        %v548 = vmul.f32 %v431, %v431
        %v549 = vmul.f32 %v434, %v434
        %v550 = vmul.f32 %v436, %v436
        %v551 = vmul.f32 %v439, %v439
        %v552 = vmul.f32 %v441, %v441
        %v553 = vmul.f32 %v444, %v444
        %v554 = vmul.f32 %v446, %v446
        %v555 = vmul.f32 %v449, %v449
        %v556 = vmul.f32 %v451, %v451
        %v557 = vmul.f32 %v454, %v454
        %v558 = vmul.f32 %v456, %v456
        %v559 = vadd.f32 %v527, %v528
        %v560 = vadd.f32 %v559, %v529
        %v561 = vadd.f32 %v560, %v530
        %v562 = vadd.f32 %v561, %v531
        %v563 = vadd.f32 %v562, %v532
        %v564 = vadd.f32 %v563, %v533
        %v565 = vadd.f32 %v564, %v534
        %v566 = vadd.f32 %v565, %v535
        %v567 = vadd.f32 %v566, %v536
        %v568 = vadd.f32 %v567, %v537
        %v569 = vadd.f32 %v568, %v538
        %v570 = vadd.f32 %v569, %v539
        %v571 = vadd.f32 %v570, %v540
        %v572 = vadd.f32 %v571, %v541
        %v573 = vadd.f32 %v572, %v542
        %v574 = vadd.f32 %v573, %v543
        %v575 = vadd.f32 %v574, %v544
        %v576 = vadd.f32 %v575, %v545
        %v577 = vadd.f32 %v576, %v546
        %v578 = vadd.f32 %v577, %v547
        %v579 = vadd.f32 %v578, %v548
        %v580 = vadd.f32 %v579, %v549
        %v581 = vadd.f32 %v580, %v550
        %v582 = vadd.f32 %v581, %v551
        %v583 = vadd.f32 %v582, %v552
        %v584 = vadd.f32 %v583, %v553
        %v585 = vadd.f32 %v584, %v554
        %v586 = vadd.f32 %v585, %v555
        %v587 = vadd.f32 %v586, %v556
        %v588 = vadd.f32 %v587, %v557
        %v589 = vadd.f32 %v588, %v558
        %v590 = vrot.slane %v589, 4
        %v591 = vadd.f32 %v589, %v590
        %v592 = vrot.slane %v591, 2
        %v593 = vadd.f32 %v591, %v592
        %v594 = vrot.slane %v593, 1
        %v595 = vadd.f32 %v593, %v594
        %vm596 = vcmask 1040384
        %v597 = vsel %vm596, %v526, %v595
        %598 = vst [vmem:[%s175] sm:$0x3] %v597
        %s599 = sand.u32 %s76, 1
        %s600 = scalar_lea.sflag [#allocation3], %s599
        %s601 = sand.u32 %s76, 1
        %s602 = smul.addr %s601, 256
        %s603 = scalar_lea.vmem [#allocation2], %s602
        %s604 = sand.u32 %s102, 1
        %s605 = scalar_lea.sflag [#allocation5], %s604
        %s606 = sand.u32 %s102, 1
        %s607 = smul.addr %s606, 2
        %s608 = scalar_lea.vmem [#allocation4], %s607
        // Predicated region
        $region29: #{tpu_custom_call.1} parent=27 // pred_check
          %p609 = pneg %p86
        $region30: #{tpu_custom_call.1} parent=27 // pred_check_branch
          %611 = sbr.rel (%p609) target = $region32
        $region31: #{tpu_custom_call.1} parent=27 // pred_region
          %s612 = smul.u32 32, %s21
          %614 = vsyncadd %s600, 0
          %s615 = smul.addr %s612, 8
          %s616 = scalar_lea.hbm %s2, %s615
          %s617 = sshll.u32 %s603, 4
          %s618 = int_to_ptr.vmem [resolvable:$true] %s617
          %s619 = sshll.u32 %s616, 4
          %s620 = int_to_ptr.hbm [resolvable:$true] %s619
          %625 = dma.vmem_to_hbm [thread:$0]  %s618, 4096, %s620, %s600, 128, 128, 8
        $region32: #{tpu_custom_call.1} parent=27 // pred_fallthru
          _
        // Predicated region
        $region33: #{tpu_custom_call.1} parent=27 // pred_check
          %p626 = pneg %p112
        $region34: #{tpu_custom_call.1} parent=27 // pred_check_branch
          %628 = sbr.rel (%p626) target = $region36
        $region35: #{tpu_custom_call.1} parent=27 // pred_region
          %630 = vsyncadd %s605, 0
          %s631 = smul.addr %s21, 2
          %s632 = scalar_lea.hbm %s3, %s631
          %s634 = sshll.u32 %s608, 4
          %s635 = int_to_ptr.vmem [resolvable:$true] %s634
          %s636 = sshll.u32 %s632, 4
          %s637 = int_to_ptr.hbm [resolvable:$true] %s636
          %639 = dma.vmem_to_hbm [thread:$0]  %s635, 32, %s637, %s605
        $region36: #{tpu_custom_call.1} parent=27 // pred_fallthru
          _
      $region28: #{tpu_custom_call.1} parent=5 // pred_fallthru
        _
      %p640 = scmp.le.s32.totalorder 2, %s16
      // Predicated region
      $region37: #{tpu_custom_call.1} parent=5 // pred_check
        %p641 = pneg %p640
      $region38: #{tpu_custom_call.1} parent=5 // pred_check_branch
        %643 = sbr.rel (%p641) target = $region40
      $region39: #{tpu_custom_call.1} parent=5 // pred_region
        %s644 = ssub.s32 %s16, 2
        // Predicated region
        $region41: #{tpu_custom_call.1} parent=39 // pred_check
          %p645 = pneg %p92
        $region42: #{tpu_custom_call.1} parent=39 // pred_check_branch
          %647 = sbr.rel (%p645) target = $region44
        $region43: #{tpu_custom_call.1} parent=39 // pred_region
          %s648 = sand.u32 %s77, 1
          %s649 = scalar_lea.sflag [#allocation3], %s648
          %s650 = sand.u32 %s77, 1
          %s651 = smul.addr %s650, 256
          %s652 = scalar_lea.vmem [#allocation2], %s651
          %654 = dma.done %s649, 4096
        $region44: #{tpu_custom_call.1} parent=39 // pred_fallthru
          _
        // Predicated region
        $region45: #{tpu_custom_call.1} parent=39 // pred_check
          %p655 = pneg %p118
        $region46: #{tpu_custom_call.1} parent=39 // pred_check_branch
          %657 = sbr.rel (%p655) target = $region48
        $region47: #{tpu_custom_call.1} parent=39 // pred_region
          %s658 = sand.u32 %s103, 1
          %s659 = scalar_lea.sflag [#allocation5], %s658
          %s660 = sand.u32 %s103, 1
          %s661 = smul.addr %s660, 2
          %s662 = scalar_lea.vmem [#allocation4], %s661
          %664 = dma.done %s659, 32
        $region48: #{tpu_custom_call.1} parent=39 // pred_fallthru
          _
      $region40: #{tpu_custom_call.1} parent=5 // pred_fallthru
        _
    $region6: #{tpu_custom_call.1} parent=1 // loop_footer
      %s20 = sadd.s32 1, %s16
    $region7: #{tpu_custom_call.1} parent=1 // loop_footer_branch
      %15 = sbr.rel target = $region3
    $region8: #{tpu_custom_call.1} parent=1 // loop_exit
      _
    %665 = vsyncpa [#allocation3], 1
    %s666 = scalar_lea.sflag [#allocation3], 1
    %667 = vsyncpa %s666, 1
    %668 = vsyncpa [#allocation5], 1
    %s669 = scalar_lea.sflag [#allocation5], 1
    %670 = vsyncpa %s669, 1

</llo_original>
